<compile_context>
chip_gen: v7x
topology: tpu7x:2x2x1
jax: 0.10.0
libtpu: 0.0.40
codegen_flags: <defaults>
</compile_context>

<pallas_src>
import functools

import jax
import jax.numpy as jnp
from jax.experimental import pallas as pl
from jax.experimental.pallas import tpu as pltpu

LANE = 128
SUBLANE = 8


def _round_up(x, m):
    return (x + m - 1) // m * m


def _graph_trojan_kernel(
    x_ref,            # (tm, nfeat)                          f32 (cast to bf16 in-kernel)
    w1_ref, b1_ref,   # (nfeat, nfeat_p) bf16, (1, nfeat_p)  f32
    w2_ref, b2_ref,   # (nfeat_p, nfeat_p) bf16, (1, nfeat_p) f32
    wh_ref, bh_ref,   # fused heads: (nfeat_p, feat_p+edge_p) bf16, (1, feat_p+edge_p) f32
    feat_out_ref,     # (tm, feat_p) f32
    edge_out_ref,     # (tm, edge_p) bf16 (exact 0/1)
    *,
    thrd: float,
    feat_p: int,
):
    # hidden layer 1: Linear + ReLU (bf16 MXU operands, f32 accumulate / elementwise)
    x = x_ref[...].astype(w1_ref.dtype)
    h = jnp.dot(x, w1_ref[...], preferred_element_type=jnp.float32)
    h = jnp.maximum(h + b1_ref[...], 0.0)

    # hidden layer 2: Linear + ReLU
    h = jnp.dot(h.astype(w2_ref.dtype), w2_ref[...], preferred_element_type=jnp.float32)
    h = jnp.maximum(h + b2_ref[...], 0.0)

    # fused feat|edge heads: one MXU pass, split at a 128-lane-aligned boundary
    y = jnp.dot(h.astype(wh_ref.dtype), wh_ref[...], preferred_element_type=jnp.float32)
    y = y + bh_ref[...]

    feat_out_ref[...] = y[:, :feat_p].astype(feat_out_ref.dtype)
    # GradWhere forward: hard threshold (0/1 exactly representable in bf16).
    # TODO(synk): GradWhere's straight-through backward (custom autograd) is not
    # expressed here (forward-only kernel); wrap with jax.custom_vjp for training.
    edge_out_ref[...] = jnp.where(y[:, feat_p:] > thrd, 1.0, 0.0).astype(edge_out_ref.dtype)


def init_params(key, nfeat, nout):
    """Deterministic PyTorch-style init; weights stored transposed as (in, out), f32."""
    edge_dim = (nout * (nout - 1) // 2) * nout
    ks = jax.random.split(key, 8)

    def lin(kw, kb, fan_in, fan_out):
        bound = 1.0 / jnp.sqrt(fan_in)
        w = jax.random.uniform(kw, (fan_in, fan_out), jnp.float32, -bound, bound)
        b = jax.random.uniform(kb, (1, fan_out), jnp.float32, -bound, bound)
        return w, b

    w1, b1 = lin(ks[0], ks[1], nfeat, nfeat)
    w2, b2 = lin(ks[2], ks[3], nfeat, nfeat)
    wf, bf = lin(ks[4], ks[5], nfeat, nout * nfeat)
    we, be = lin(ks[6], ks[7], nfeat, edge_dim)
    return dict(w1=w1, b1=b1, w2=w2, b2=b2, wf=wf, bf=bf, we=we, be=be)


def pack_params(raw, nfeat, nout, *, operand_dtype=jnp.bfloat16, lane=LANE):
    """Zero-pad output dims to multiples of `lane`, fuse the two head weights/biases,
    and cast matmul operands to bf16 (biases stay f32).

    The layer-1 contraction dim keeps the true nfeat: x is passed unpadded and
    cast inside the kernel.  (For large MXU-bound widths on v6e/v7x, pass
    lane=256 to fill the 256x256 systolic array; keep 128 on v5e.)"""
    feat_dim = nout * nfeat
    edge_dim = (nout * (nout - 1) // 2) * nout
    nfeat_p = _round_up(nfeat, lane)
    feat_p = _round_up(feat_dim, lane)
    edge_p = _round_up(edge_dim, lane)

    def pad2(a, rows, cols, fill=0.0):
        out = jnp.full((rows, cols), fill, a.dtype)
        return out.at[: a.shape[0], : a.shape[1]].set(a)

    w1 = pad2(raw["w1"], nfeat, nfeat_p).astype(operand_dtype)
    b1 = pad2(raw["b1"], 1, nfeat_p)
    w2 = pad2(raw["w2"], nfeat_p, nfeat_p).astype(operand_dtype)
    b2 = pad2(raw["b2"], 1, nfeat_p)
    wh = jnp.concatenate(
        [pad2(raw["wf"], nfeat_p, feat_p), pad2(raw["we"], nfeat_p, edge_p)], axis=1
    ).astype(operand_dtype)
    # Padded edge-bias columns = -1e30 so the hard threshold yields 0 there
    # even when thrd < 0 (keeps the padded layout safe to hand downstream).
    bh = jnp.concatenate(
        [pad2(raw["bf"], 1, feat_p), pad2(raw["be"], 1, edge_p, fill=-1e30)], axis=1
    )

    packed = dict(w1=w1, b1=b1, w2=w2, b2=b2, wh=wh, bh=bh)
    meta = dict(nfeat=nfeat, feat_dim=feat_dim, edge_dim=edge_dim,
                nfeat_p=nfeat_p, feat_p=feat_p, edge_p=edge_p,
                operand_dtype=operand_dtype)
    return packed, meta


def _choose_row_tile(n, tm_max, row_align):
    """Row tile: >=2 grid steps when N allows (v7x megacore), aligned to bf16 packing."""
    if n >= 2 * row_align:
        return min(tm_max, _round_up(pl.cdiv(n, 2), row_align))
    return _round_up(max(n, 1), row_align)


def graph_trojan_net_forward(x, packed, meta, thrd, *, tm=512, unpad=True):
    """x: (N, nfeat) float32; packed/meta from pack_params; thrd: static float.

    unpad=True returns exact module shapes (one extra HBM slice per output);
    unpad=False returns the padded lane-dense layout (rows padded to the row
    tile, columns to 128) for consumers that can mask downstream."""
    n, nfeat = x.shape
    assert nfeat == meta["nfeat"]
    nfeat_p, feat_p, edge_p = meta["nfeat_p"], meta["feat_p"], meta["edge_p"]
    op_dtype = meta["operand_dtype"]

    # bf16 packs 16 rows per sublane group.
    row_align = 16 if op_dtype == jnp.bfloat16 else SUBLANE
    tm_eff = _choose_row_tile(n, tm, row_align)
    n_pad = _round_up(n, tm_eff)

    # No host-side feature pad or dtype cast: x goes in as f32 with its true
    # width (block_shape last dim == full array dim). Only row-pad if needed.
    x_in = x if n_pad == n else jnp.zeros((n_pad, nfeat), x.dtype).at[:n].set(x)

    grid = (n_pad // tm_eff,)
    row_block = lambda width: pl.BlockSpec((tm_eff, width), lambda i: (i, 0))
    # Constant index_map -> nothing to pipeline: single-buffer resident weights.
    resident = lambda a: pl.BlockSpec(a.shape, lambda i: (0, 0),
                                      pipeline_mode=pl.Buffered(1))

    kernel = functools.partial(_graph_trojan_kernel, thrd=float(thrd), feat_p=feat_p)

    # Explicit VMEM budget: single-buffered weights + double-buffered row tiles
    # + f32 intermediates, with 25% + 4 MiB headroom (clamped to [16, 100] MiB).
    w_bytes = sum(int(packed[k].size) * packed[k].dtype.itemsize
                  for k in ("w1", "b1", "w2", "b2", "wh", "bh"))
    io_tile_bytes = 2 * tm_eff * (nfeat * 4 + feat_p * 4 + edge_p * 2)
    interm_bytes = tm_eff * (2 * nfeat_p + feat_p + edge_p) * 4
    vmem_limit = int(1.25 * (w_bytes + io_tile_bytes + interm_bytes)) + (4 << 20)
    vmem_limit = max(16 << 20, min(vmem_limit, 100 << 20))

    flops = 2 * n_pad * (nfeat * nfeat_p + nfeat_p * nfeat_p
                         + nfeat_p * (feat_p + edge_p))
    bytes_accessed = (n_pad * nfeat * 4 + w_bytes
                      + n_pad * feat_p * 4 + n_pad * edge_p * 2)

    feat, edge = pl.pallas_call(
        kernel,
        grid=grid,
        out_shape=(
            jax.ShapeDtypeStruct((n_pad, feat_p), jnp.float32),
            jax.ShapeDtypeStruct((n_pad, edge_p), jnp.bfloat16),  # exact 0/1 bits
        ),
        in_specs=[
            row_block(nfeat),
            resident(packed["w1"]), resident(packed["b1"]),
            resident(packed["w2"]), resident(packed["b2"]),
            resident(packed["wh"]), resident(packed["bh"]),
        ],
        out_specs=(row_block(feat_p), row_block(edge_p)),
        compiler_params=pltpu.CompilerParams(
            dimension_semantics=("parallel",),
            vmem_limit_bytes=vmem_limit,
        ),
        cost_estimate=pl.CostEstimate(
            flops=flops, transcendentals=0, bytes_accessed=bytes_accessed),
    )(x_in, packed["w1"], packed["b1"], packed["w2"], packed["b2"],
      packed["wh"], packed["bh"])

    if unpad:
        return feat[:n, : meta["feat_dim"]], edge[:n, : meta["edge_dim"]]
    # Note: padded rows (>= n) carry bias-only activations; mask them downstream.
    return feat, edge


def _reference(x, raw, thrd, operand_dtype=jnp.bfloat16):
    """Pure-JAX reference with the same bf16 operand quantization + f32 accumulation."""
    q = lambda a: a.astype(operand_dtype).astype(jnp.float32)
    h = jnp.maximum(q(x) @ q(raw["w1"]) + raw["b1"], 0.0)
    h = jnp.maximum(q(h) @ q(raw["w2"]) + raw["b2"], 0.0)
    feat = q(h) @ q(raw["wf"]) + raw["bf"]
    edge_logit = q(h) @ q(raw["we"]) + raw["be"]
    edge = jnp.where(edge_logit > thrd, 1.0, 0.0)
    return feat, edge, edge_logit


if __name__ == "__main__":
    key = jax.random.PRNGKey(0)
    k_param, k_x = jax.random.split(key)

    N, NFEAT, NOUT = 8, 32, 4          # small shapes consistent with the module
    THRD = 0.1

    raw = init_params(k_param, NFEAT, NOUT)
    packed, meta = pack_params(raw, NFEAT, NOUT)
    x = jax.random.normal(k_x, (N, NFEAT), dtype=jnp.float32)

    feat, edge = graph_trojan_net_forward(x, packed, meta, THRD)
    feat = jax.block_until_ready(feat)
    edge = jax.block_until_ready(edge)

    feat_ref, edge_ref, edge_logit = _reference(x, raw, THRD)
    assert feat.shape == (N, NOUT * NFEAT)
    assert edge.shape == (N, (NOUT * (NOUT - 1) // 2) * NOUT)
    assert jnp.allclose(feat, feat_ref, atol=2e-3, rtol=2e-3), \
        float(jnp.max(jnp.abs(feat - feat_ref)))
    # Hard-threshold bits may legitimately flip when the pre-threshold value is
    # within MXU-accumulation-order noise of thrd; only flag mismatches away from it.
    edge_f32 = edge.astype(jnp.float32)
    mismatch = edge_f32 != edge_ref
    assert bool(jnp.all(~mismatch | (jnp.abs(edge_logit - THRD) < 5e-3))), \
        int(jnp.sum(mismatch))

    print("KERNEL_OK")
</pallas_src>

<mosaic_0001>
module attributes {stable_mosaic.version = 11 : i64} {
  func.func @_graph_trojan_kernel(%arg0: i32, %arg1: memref<16x32xf32, #tpu.memory_space<vmem>>, %arg2: memref<32x128xbf16, #tpu.memory_space<vmem>>, %arg3: memref<1x128xf32, #tpu.memory_space<vmem>>, %arg4: memref<128x128xbf16, #tpu.memory_space<vmem>>, %arg5: memref<1x128xf32, #tpu.memory_space<vmem>>, %arg6: memref<128x256xbf16, #tpu.memory_space<vmem>>, %arg7: memref<1x256xf32, #tpu.memory_space<vmem>>, %arg8: memref<16x128xf32, #tpu.memory_space<vmem>>, %arg9: memref<16x128xbf16, #tpu.memory_space<vmem>>) attributes {dimension_semantics = [#tpu.dimension_semantics<parallel>], iteration_bounds = array<i64: 1>, scalar_prefetch = 0 : i64, scratch_operands = 0 : i64, tpu.core_type = #tpu.core_type<tc>, window_params = [{transform_indices = @transform_0, window_bounds = array<i64: 16, 32>}, {pipeline_mode = #tpu.pipeline_mode<synchronous>, transform_indices = @transform_1, window_bounds = array<i64: 32, 128>}, {pipeline_mode = #tpu.pipeline_mode<synchronous>, transform_indices = @transform_2, window_bounds = array<i64: 1, 128>}, {pipeline_mode = #tpu.pipeline_mode<synchronous>, transform_indices = @transform_3, window_bounds = array<i64: 128, 128>}, {pipeline_mode = #tpu.pipeline_mode<synchronous>, transform_indices = @transform_4, window_bounds = array<i64: 1, 128>}, {pipeline_mode = #tpu.pipeline_mode<synchronous>, transform_indices = @transform_5, window_bounds = array<i64: 128, 256>}, {pipeline_mode = #tpu.pipeline_mode<synchronous>, transform_indices = @transform_6, window_bounds = array<i64: 1, 256>}, {transform_indices = @transform_7, window_bounds = array<i64: 16, 128>}, {transform_indices = @transform_8, window_bounds = array<i64: 16, 128>}]} {
    %c0 = arith.constant 0 : index
    %c0_0 = arith.constant 0 : index
    %0 = vector.load %arg1[%c0, %c0_0] : memref<16x32xf32, #tpu.memory_space<vmem>>, vector<16x32xf32>
    %1 = arith.truncf %0 : vector<16x32xf32> to vector<16x32xbf16>
    %c0_1 = arith.constant 0 : index
    %c0_2 = arith.constant 0 : index
    %2 = vector.load %arg2[%c0_1, %c0_2] : memref<32x128xbf16, #tpu.memory_space<vmem>>, vector<32x128xbf16>
    %cst = arith.constant dense<0.000000e+00> : vector<16x128xf32>
    %3 = tpu.matmul %1, %2, %cst {dimension_numbers = #tpu.dot_dimension_numbers<[1], [0], [0], [1], [0, 0, 1, 1], [], []>} : vector<16x32xbf16>, vector<32x128xbf16>, vector<16x128xf32> -> vector<16x128xf32>
    %c0_3 = arith.constant 0 : index
    %c0_4 = arith.constant 0 : index
    %4 = vector.load %arg3[%c0_3, %c0_4] : memref<1x128xf32, #tpu.memory_space<vmem>>, vector<1x128xf32>
    %5 = vector.broadcast %4 : vector<1x128xf32> to vector<16x128xf32>
    %6 = arith.addf %3, %5 : vector<16x128xf32>
    %cst_5 = arith.constant 0.000000e+00 : f32
    %7 = vector.broadcast %cst_5 : f32 to vector<16x128xf32>
    %8 = arith.maximumf %6, %7 : vector<16x128xf32>
    %9 = arith.truncf %8 : vector<16x128xf32> to vector<16x128xbf16>
    %c0_6 = arith.constant 0 : index
    %c0_7 = arith.constant 0 : index
    %10 = vector.load %arg4[%c0_6, %c0_7] : memref<128x128xbf16, #tpu.memory_space<vmem>>, vector<128x128xbf16>
    %cst_8 = arith.constant dense<0.000000e+00> : vector<16x128xf32>
    %11 = tpu.matmul %9, %10, %cst_8 {dimension_numbers = #tpu.dot_dimension_numbers<[1], [0], [0], [1], [0, 0, 1, 1], [], []>} : vector<16x128xbf16>, vector<128x128xbf16>, vector<16x128xf32> -> vector<16x128xf32>
    %c0_9 = arith.constant 0 : index
    %c0_10 = arith.constant 0 : index
    %12 = vector.load %arg5[%c0_9, %c0_10] : memref<1x128xf32, #tpu.memory_space<vmem>>, vector<1x128xf32>
    %13 = vector.broadcast %12 : vector<1x128xf32> to vector<16x128xf32>
    %14 = arith.addf %11, %13 : vector<16x128xf32>
    %cst_11 = arith.constant 0.000000e+00 : f32
    %15 = vector.broadcast %cst_11 : f32 to vector<16x128xf32>
    %16 = arith.maximumf %14, %15 : vector<16x128xf32>
    %17 = arith.truncf %16 : vector<16x128xf32> to vector<16x128xbf16>
    %c0_12 = arith.constant 0 : index
    %c0_13 = arith.constant 0 : index
    %18 = vector.load %arg6[%c0_12, %c0_13] : memref<128x256xbf16, #tpu.memory_space<vmem>>, vector<128x256xbf16>
    %cst_14 = arith.constant dense<0.000000e+00> : vector<16x256xf32>
    %19 = tpu.matmul %17, %18, %cst_14 {dimension_numbers = #tpu.dot_dimension_numbers<[1], [0], [0], [1], [0, 0, 1, 1], [], []>} : vector<16x128xbf16>, vector<128x256xbf16>, vector<16x256xf32> -> vector<16x256xf32>
    %c0_15 = arith.constant 0 : index
    %c0_16 = arith.constant 0 : index
    %20 = vector.load %arg7[%c0_15, %c0_16] : memref<1x256xf32, #tpu.memory_space<vmem>>, vector<1x256xf32>
    %21 = vector.broadcast %20 : vector<1x256xf32> to vector<16x256xf32>
    %22 = arith.addf %19, %21 : vector<16x256xf32>
    %23 = vector.extract_strided_slice %22 {offsets = [0, 0], sizes = [16, 128], strides = [1, 1]} : vector<16x256xf32> to vector<16x128xf32>
    %c0_17 = arith.constant 0 : index
    %c0_18 = arith.constant 0 : index
    %24 = vector.load %arg8[%c0_17, %c0_18] : memref<16x128xf32, #tpu.memory_space<vmem>>, vector<16x128xf32>
    tpu.vector_store %arg8[%c0_17, %c0_18], %23 {strides = array<i32>} : memref<16x128xf32, #tpu.memory_space<vmem>>, vector<16x128xf32>,
    %25 = vector.extract_strided_slice %22 {offsets = [0, 128], sizes = [16, 128], strides = [1, 1]} : vector<16x256xf32> to vector<16x128xf32>
    %cst_19 = arith.constant 1.000000e-01 : f32
    %26 = vector.broadcast %cst_19 : f32 to vector<16x128xf32>
    %27 = arith.cmpf ogt, %25, %26 : vector<16x128xf32>
    %cst_20 = arith.constant 1.000000e+00 : f32
    %cst_21 = arith.constant 0.000000e+00 : f32
    %28 = vector.broadcast %cst_20 : f32 to vector<16x128xf32>
    %29 = vector.broadcast %cst_21 : f32 to vector<16x128xf32>
    %30 = arith.select %27, %28, %29 : vector<16x128xi1>, vector<16x128xf32>
    %31 = arith.truncf %30 : vector<16x128xf32> to vector<16x128xbf16>
    %c0_22 = arith.constant 0 : index
    %c0_23 = arith.constant 0 : index
    %32 = vector.load %arg9[%c0_22, %c0_23] : memref<16x128xbf16, #tpu.memory_space<vmem>>, vector<16x128xbf16>
    tpu.vector_store %arg9[%c0_22, %c0_23], %31 {strides = array<i32>} : memref<16x128xbf16, #tpu.memory_space<vmem>>, vector<16x128xbf16>,
    return
  }
  func.func @transform_0(%arg0: i32) -> (i32, i32) {
    %c0_i32 = arith.constant 0 : i32
    %c0_i32_0 = arith.constant 0 : i32
    return %arg0, %c0_i32 : i32, i32
  }
  func.func @transform_1(%arg0: i32) -> (i32, i32) {
    %c0_i32 = arith.constant 0 : i32
    %c0_i32_0 = arith.constant 0 : i32
    %c0_i32_1 = arith.constant 0 : i32
    return %c0_i32, %c0_i32_0 : i32, i32
  }
  func.func @transform_2(%arg0: i32) -> (i32, i32) {
    %c0_i32 = arith.constant 0 : i32
    %c0_i32_0 = arith.constant 0 : i32
    %c0_i32_1 = arith.constant 0 : i32
    return %c0_i32, %c0_i32_0 : i32, i32
  }
  func.func @transform_3(%arg0: i32) -> (i32, i32) {
    %c0_i32 = arith.constant 0 : i32
    %c0_i32_0 = arith.constant 0 : i32
    %c0_i32_1 = arith.constant 0 : i32
    return %c0_i32, %c0_i32_0 : i32, i32
  }
  func.func @transform_4(%arg0: i32) -> (i32, i32) {
    %c0_i32 = arith.constant 0 : i32
    %c0_i32_0 = arith.constant 0 : i32
    %c0_i32_1 = arith.constant 0 : i32
    return %c0_i32, %c0_i32_0 : i32, i32
  }
  func.func @transform_5(%arg0: i32) -> (i32, i32) {
    %c0_i32 = arith.constant 0 : i32
    %c0_i32_0 = arith.constant 0 : i32
    %c0_i32_1 = arith.constant 0 : i32
    return %c0_i32, %c0_i32_0 : i32, i32
  }
  func.func @transform_6(%arg0: i32) -> (i32, i32) {
    %c0_i32 = arith.constant 0 : i32
    %c0_i32_0 = arith.constant 0 : i32
    %c0_i32_1 = arith.constant 0 : i32
    return %c0_i32, %c0_i32_0 : i32, i32
  }
  func.func @transform_7(%arg0: i32) -> (i32, i32) {
    %c0_i32 = arith.constant 0 : i32
    %c0_i32_0 = arith.constant 0 : i32
    return %arg0, %c0_i32 : i32, i32
  }
  func.func @transform_8(%arg0: i32) -> (i32, i32) {
    %c0_i32 = arith.constant 0 : i32
    %c0_i32_0 = arith.constant 0 : i32
    return %arg0, %c0_i32 : i32, i32
  }
}

</mosaic_0001>

<llo_original>
// kernel: tpu_custom_call.1
$region0: #{tpu_custom_call.1}
  #allocation0 [shape = 'u32[]', space=smem, size = 0x4, offset = 0x4, fixed_abs, tag = 'smem constant byte address 0x4 - core index']
  #allocation1 [shape = 'u32[144,128]{1,0:T(1,128)}', space=vmem, size = 0x12000, scoped, tag = 'internal scratch']
  %s0 = inlined_call_operand.hbm [shape: f32[16,32], index: 0, kind: input, shape index: {}]
  %s1 = inlined_call_operand.hbm [shape: bf16[32,128], index: 1, kind: input, shape index: {}]
  %s2 = inlined_call_operand.vmem [shape: f32[1,128], index: 2, kind: input, shape index: {}]
  %s3 = inlined_call_operand.hbm [shape: bf16[128,128], index: 3, kind: input, shape index: {}]
  %s4 = inlined_call_operand.vmem [shape: f32[1,128], index: 4, kind: input, shape index: {}]
  %s5 = inlined_call_operand.hbm [shape: bf16[128,256], index: 5, kind: input, shape index: {}]
  %s6 = inlined_call_operand.vmem [shape: f32[1,256], index: 6, kind: input, shape index: {}]
  %s7 = inlined_call_operand.hbm [shape: f32[16,128], index: 7, kind: output, shape index: {0}]
  %s8 = inlined_call_operand.hbm [shape: bf16[16,128], index: 8, kind: output, shape index: {1}]
  %9 = xla_tuple %s7, %s8
  %s10 = sld [smem:[#allocation0]]
  $region62: #{tpu_custom_call.1} parent=0
    _
  %s12 = ssub.s32 1, %s10
  %s13 = scalar_select 0, %s12, %s10
  $region1: #{tpu_custom_call.1} parent=0
    #allocation2 [shape = 'u8[8192]{0}', space=vmem, size = 0x2000, scoped, tag = 'input window, operand 0, single buffered']
    #allocation3 [shape = 's32[1]{0}', space=sflag, size = 0x4, scoped, tag = 'scoped memory for tpu_custom_call.1']
    #allocation4 [shape = 's32[1]{0}', space=sflag, size = 0x4, scoped, tag = 'scoped memory for tpu_custom_call.1']
    #allocation5 [shape = 'u8[8192]{0}', space=vmem, size = 0x2000, scoped, tag = 'input window, operand 1, single buffered']
    #allocation6 [shape = 's32[1]{0}', space=sflag, size = 0x4, scoped, tag = 'scoped memory for tpu_custom_call.1']
    #allocation7 [shape = 'u8[32768]{0}', space=vmem, size = 0x8000, scoped, tag = 'input window, operand 3, single buffered']
    #allocation8 [shape = 'u8[65536]{0}', space=vmem, size = 0x10000, scoped, tag = 'input window, operand 5, single buffered']
    #allocation9 [shape = 's32[1]{0}', space=sflag, size = 0x4, scoped, tag = 'scoped memory for tpu_custom_call.1']
    #allocation10 [shape = 'u8[8192]{0}', space=vmem, size = 0x2000, scoped, tag = 'output window, operand 0, single buffered']
    #allocation11 [shape = 'u8[4096]{0}', space=vmem, size = 0x1000, scoped, tag = 'output window, operand 1, single buffered']
    #allocation12 [shape = 's32[1]{0}', space=sflag, size = 0x4, scoped, tag = 'scoped memory for tpu_custom_call.1']
    %14 = vsyncpa [#allocation3], 0
    %15 = vsyncpa [#allocation6], 0
    %16 = vsyncpa [#allocation9], 0
    %17 = vsyncpa [#allocation4], 0
    %18 = vsyncpa [#allocation12], 0
    // Predicated region
    $region2: #{tpu_custom_call.1} parent=1 // pred_check
      _
    $region3: #{tpu_custom_call.1} parent=1 // pred_check_branch
      %20 = sbr.rel (0) target = $region5
    $region4: #{tpu_custom_call.1} parent=1 // pred_region
      %s22 = ssub.s32 256, 256
      %23 = vsyncadd [#allocation3], %s22
      %s24 = sshll.u32 [#allocation2], 4
      %s25 = int_to_ptr.vmem [resolvable:$true] %s24
      %30 = dma.hbm_to_vmem [thread:$0]  %s0, 256, %s25, [#allocation3], 128, 128, 8
    $region5: #{tpu_custom_call.1} parent=1 // pred_fallthru
      _
    // Predicated region
    $region6: #{tpu_custom_call.1} parent=1 // pred_check
      _
    $region7: #{tpu_custom_call.1} parent=1 // pred_check_branch
      %32 = sbr.rel (0) target = $region9
    $region8: #{tpu_custom_call.1} parent=1 // pred_region
      %s34 = ssub.s32 256, 256
      %35 = vsyncadd [#allocation6], %s34
      %s36 = sshll.u32 [#allocation5], 4
      %s37 = int_to_ptr.vmem [resolvable:$true] %s36
      %42 = dma.hbm_to_vmem [thread:$0]  %s1, 256, %s37, [#allocation6], 64, 64, 4
    $region9: #{tpu_custom_call.1} parent=1 // pred_fallthru
      _
    // Predicated region
    $region10: #{tpu_custom_call.1} parent=1 // pred_check
      _
    $region11: #{tpu_custom_call.1} parent=1 // pred_check_branch
      %44 = sbr.rel (0) target = $region13
    $region12: #{tpu_custom_call.1} parent=1 // pred_region
      _
    $region13: #{tpu_custom_call.1} parent=1 // pred_fallthru
      _
    // Predicated region
    $region14: #{tpu_custom_call.1} parent=1 // pred_check
      _
    $region15: #{tpu_custom_call.1} parent=1 // pred_check_branch
      %46 = sbr.rel (0) target = $region17
    $region16: #{tpu_custom_call.1} parent=1 // pred_region
      %s48 = ssub.s32 1024, 1024
      %49 = vsyncadd [#allocation6], %s48
      %s50 = sshll.u32 [#allocation7], 4
      %s51 = int_to_ptr.vmem [resolvable:$true] %s50
      %56 = dma.hbm_to_vmem [thread:$0]  %s3, 1024, %s51, [#allocation6], 64, 64, 4
    $region17: #{tpu_custom_call.1} parent=1 // pred_fallthru
      _
    // Predicated region
    $region18: #{tpu_custom_call.1} parent=1 // pred_check
      _
    $region19: #{tpu_custom_call.1} parent=1 // pred_check_branch
      %58 = sbr.rel (0) target = $region21
    $region20: #{tpu_custom_call.1} parent=1 // pred_region
      _
    $region21: #{tpu_custom_call.1} parent=1 // pred_fallthru
      _
    // Predicated region
    $region22: #{tpu_custom_call.1} parent=1 // pred_check
      _
    $region23: #{tpu_custom_call.1} parent=1 // pred_check_branch
      %60 = sbr.rel (0) target = $region25
    $region24: #{tpu_custom_call.1} parent=1 // pred_region
      %s62 = ssub.s32 2048, 2048
      %63 = vsyncadd [#allocation9], %s62
      %s64 = sshll.u32 [#allocation8], 4
      %s65 = int_to_ptr.vmem [resolvable:$true] %s64
      %70 = dma.hbm_to_vmem [thread:$0]  %s5, 2048, %s65, [#allocation9], 128, 128, 8
    $region25: #{tpu_custom_call.1} parent=1 // pred_fallthru
      _
    // Predicated region
    $region26: #{tpu_custom_call.1} parent=1 // pred_check
      _
    $region27: #{tpu_custom_call.1} parent=1 // pred_check_branch
      %72 = sbr.rel (0) target = $region29
    $region28: #{tpu_custom_call.1} parent=1 // pred_region
      _
    $region29: #{tpu_custom_call.1} parent=1 // pred_fallthru
      _
    // Predicated region
    $region30: #{tpu_custom_call.1} parent=1 // pred_check
      _
    $region31: #{tpu_custom_call.1} parent=1 // pred_check_branch
      %74 = sbr.rel (0) target = $region33
    $region32: #{tpu_custom_call.1} parent=1 // pred_region
      %75 = dma.done [#allocation3], 256
    $region33: #{tpu_custom_call.1} parent=1 // pred_fallthru
      _
    // Predicated region
    $region34: #{tpu_custom_call.1} parent=1 // pred_check
      _
    $region35: #{tpu_custom_call.1} parent=1 // pred_check_branch
      %77 = sbr.rel (0) target = $region37
    $region36: #{tpu_custom_call.1} parent=1 // pred_region
      %78 = dma.done [#allocation6], 256
    $region37: #{tpu_custom_call.1} parent=1 // pred_fallthru
      _
    // Predicated region
    $region38: #{tpu_custom_call.1} parent=1 // pred_check
      _
    $region39: #{tpu_custom_call.1} parent=1 // pred_check_branch
      %80 = sbr.rel (0) target = $region41
    $region40: #{tpu_custom_call.1} parent=1 // pred_region
      %81 = dma.done [#allocation6], 1024
    $region41: #{tpu_custom_call.1} parent=1 // pred_fallthru
      _
    // Predicated region
    $region42: #{tpu_custom_call.1} parent=1 // pred_check
      _
    $region43: #{tpu_custom_call.1} parent=1 // pred_check_branch
      %83 = sbr.rel (0) target = $region45
    $region44: #{tpu_custom_call.1} parent=1 // pred_region
      %84 = dma.done [#allocation9], 2048
    $region45: #{tpu_custom_call.1} parent=1 // pred_fallthru
      _
    %v86 = vld [vmem:[#allocation2] sm:$0xff]
    %v87 = vld [vmem:[#allocation2 + $0x8] sm:$0xff]
    %v88 = vpack.c.bf16 %v87, %v86
    %v89 = vld [vmem:[#allocation5] sm:$0xf]
    %v90 = vld [vmem:[#allocation5 + $0x4] sm:$0xf]
    %v91 = vld [vmem:[#allocation5 + $0x8] sm:$0xf]
    %v92 = vld [vmem:[#allocation5 + $0xc] sm:$0xf]
    %v93 = vld [vmem:[%s2] sm:$0x1]
    %v95 = vlaneseq
    %v96 = vshrl.u32 %v95, 7
    %v97 = vsub.s32 0, %v96
    %v98 = vrot.slane %v93, %v97
    %v104 = vunpack.c.l.b16 %v89
    %v105 = vunpack.c.l.b16 %v90
    %v106 = vunpack.c.l.b16 %v91
    %v107 = vunpack.c.l.b16 %v92
    %v108 = vpack.c.b16 %v105, %v104
    %v109 = vpack.c.b16 %v107, %v106
    %vm112 = vcmask 261120
    %v114 = vsel %vm112, %v88, 0
    %116 = vmatprep.subr.bf16.mxu0 0
    %117 = vmatpush1.bf16.msra.mxu0 %v108
    %118 = vmatprep.subr.bf16.mxu0 0
    %119 = vmatpush1.bf16.msra.mxu0 %v109
    %120 = vmatprep.subr.bf16.mxu0 0
    %121 = vmatpush1.bf16.msra.mxu0 0
    %122 = vmatprep.subr.bf16.mxu0 0
    %123 = vmatpush1.bf16.msra.mxu0 0
    %124 = vmatprep.subr.bf16.mxu0 0
    %125 = vmatpush1.bf16.msra.mxu0 0
    %126 = vmatprep.subr.bf16.mxu0 0
    %127 = vmatpush1.bf16.msra.mxu0 0
    %128 = vmatprep.subr.bf16.mxu0 0
    %129 = vmatpush1.bf16.msra.mxu0 0
    %130 = vmatprep.subr.bf16.mxu0 0
    %131 = vmatpush1.bf16.msra.mxu0 0
    %132 = vmatprep.subr.bf16.mxu0 0
    %133 = vmatpush1.bf16.msra.mxu0 0
    %134 = vmatprep.subr.bf16.mxu0 0
    %135 = vmatpush1.bf16.msra.mxu0 0
    %136 = vmatprep.subr.bf16.mxu0 0
    %137 = vmatpush1.bf16.msra.mxu0 0
    %138 = vmatprep.subr.bf16.mxu0 0
    %139 = vmatpush1.bf16.msra.mxu0 0
    %140 = vmatprep.subr.bf16.mxu0 0
    %141 = vmatpush1.bf16.msra.mxu0 0
    %142 = vmatprep.subr.bf16.mxu0 0
    %143 = vmatpush1.bf16.msra.mxu0 0
    %144 = vmatprep.subr.bf16.mxu0 0
    %145 = vmatpush1.bf16.msra.mxu0 0
    %146 = vmatprep.subr.bf16.mxu0 0
    %147 = vmatpush1.bf16.msra.mxu0 0
    %148 = vmatprep.mubr.bf16.mxu0 0
    %149 = vmatmul.mubr.bf16.gmra.mrb[0].mxu0 %v114
    %v150 = vpop.f32.mrb[0].mxu0
    %v151 = vadd.f32 %v98, %v150
    %v152 = vpop.f32.mrb[0].mxu0
    %v153 = vpop.f32.mrb[0].mxu0
    %v154 = vadd.f32 %v98, %v153
    %v155 = vpop.f32.mrb[0].mxu0
    %156 = vdwg.mxu0
    %v157 = vmax.f32 %v151, 0.0
    %v158 = vmax.f32 %v154, 0.0
    %v159 = vpack.c.bf16 %v158, %v157
    %v160 = vld [vmem:[#allocation7] sm:$0xf]
    %v161 = vld [vmem:[#allocation7 + $0x4] sm:$0xf]
    %v162 = vld [vmem:[#allocation7 + $0x8] sm:$0xf]
    %v163 = vld [vmem:[#allocation7 + $0xc] sm:$0xf]
    %v164 = vld [vmem:[#allocation7 + $0x10] sm:$0xf]
    %v165 = vld [vmem:[#allocation7 + $0x14] sm:$0xf]
    %v166 = vld [vmem:[#allocation7 + $0x18] sm:$0xf]
    %v167 = vld [vmem:[#allocation7 + $0x1c] sm:$0xf]
    %v168 = vld [vmem:[#allocation7 + $0x20] sm:$0xf]
    %v169 = vld [vmem:[#allocation7 + $0x24] sm:$0xf]
    %v170 = vld [vmem:[#allocation7 + $0x28] sm:$0xf]
    %v171 = vld [vmem:[#allocation7 + $0x2c] sm:$0xf]
    %v172 = vld [vmem:[#allocation7 + $0x30] sm:$0xf]
    %v173 = vld [vmem:[#allocation7 + $0x34] sm:$0xf]
    %v174 = vld [vmem:[#allocation7 + $0x38] sm:$0xf]
    %v175 = vld [vmem:[#allocation7 + $0x3c] sm:$0xf]
    %v176 = vld [vmem:[%s4] sm:$0x1]
    %v178 = vlaneseq
    %v179 = vshrl.u32 %v178, 7
    %v180 = vsub.s32 0, %v179
    %v181 = vrot.slane %v176, %v180
    %v199 = vunpack.c.l.b16 %v160
    %v200 = vunpack.c.l.b16 %v161
    %v201 = vunpack.c.l.b16 %v162
    %v202 = vunpack.c.l.b16 %v163
    %v203 = vunpack.c.l.b16 %v164
    %v204 = vunpack.c.l.b16 %v165
    %v205 = vunpack.c.l.b16 %v166
    %v206 = vunpack.c.l.b16 %v167
    %v207 = vunpack.c.l.b16 %v168
    %v208 = vunpack.c.l.b16 %v169
    %v209 = vunpack.c.l.b16 %v170
    %v210 = vunpack.c.l.b16 %v171
    %v211 = vunpack.c.l.b16 %v172
    %v212 = vunpack.c.l.b16 %v173
    %v213 = vunpack.c.l.b16 %v174
    %v214 = vunpack.c.l.b16 %v175
    %v215 = vpack.c.b16 %v200, %v199
    %v216 = vpack.c.b16 %v202, %v201
    %v217 = vpack.c.b16 %v204, %v203
    %v218 = vpack.c.b16 %v206, %v205
    %v219 = vpack.c.b16 %v208, %v207
    %v220 = vpack.c.b16 %v210, %v209
    %v221 = vpack.c.b16 %v212, %v211
    %v222 = vpack.c.b16 %v214, %v213
    %231 = vmatprep.subr.bf16.mxu0 0
    %232 = vmatpush1.bf16.msra.mxu0 %v215
    %233 = vmatprep.subr.bf16.mxu0 0
    %234 = vmatpush1.bf16.msra.mxu0 %v216
    %235 = vmatprep.subr.bf16.mxu0 0
    %236 = vmatpush1.bf16.msra.mxu0 %v217
    %237 = vmatprep.subr.bf16.mxu0 0
    %238 = vmatpush1.bf16.msra.mxu0 %v218
    %239 = vmatprep.subr.bf16.mxu0 0
    %240 = vmatpush1.bf16.msra.mxu0 %v219
    %241 = vmatprep.subr.bf16.mxu0 0
    %242 = vmatpush1.bf16.msra.mxu0 %v220
    %243 = vmatprep.subr.bf16.mxu0 0
    %244 = vmatpush1.bf16.msra.mxu0 %v221
    %245 = vmatprep.subr.bf16.mxu0 0
    %246 = vmatpush1.bf16.msra.mxu0 %v222
    %247 = vmatprep.subr.bf16.mxu0 0
    %248 = vmatpush1.bf16.msra.mxu0 0
    %249 = vmatprep.subr.bf16.mxu0 0
    %250 = vmatpush1.bf16.msra.mxu0 0
    %251 = vmatprep.subr.bf16.mxu0 0
    %252 = vmatpush1.bf16.msra.mxu0 0
    %253 = vmatprep.subr.bf16.mxu0 0
    %254 = vmatpush1.bf16.msra.mxu0 0
    %255 = vmatprep.subr.bf16.mxu0 0
    %256 = vmatpush1.bf16.msra.mxu0 0
    %257 = vmatprep.subr.bf16.mxu0 0
    %258 = vmatpush1.bf16.msra.mxu0 0
    %259 = vmatprep.subr.bf16.mxu0 0
    %260 = vmatpush1.bf16.msra.mxu0 0
    %261 = vmatprep.subr.bf16.mxu0 0
    %262 = vmatpush1.bf16.msra.mxu0 0
    %263 = vmatprep.mubr.bf16.mxu0 0
    %264 = vmatmul.mubr.bf16.gmra.mrb[0].mxu0 %v159
    %v265 = vpop.f32.mrb[0].mxu0
    %v266 = vadd.f32 %v181, %v265
    %v267 = vpop.f32.mrb[0].mxu0
    %v268 = vpop.f32.mrb[0].mxu0
    %v269 = vadd.f32 %v181, %v268
    %v270 = vpop.f32.mrb[0].mxu0
    %271 = vdwg.mxu0
    %v272 = vmax.f32 %v266, 0.0
    %v273 = vmax.f32 %v269, 0.0
    %v274 = vpack.c.bf16 %v273, %v272
    %v275 = vld [vmem:[#allocation8] sm:$0xff]
    %v276 = vld [vmem:[#allocation8 + $0x8] sm:$0xff]
    %v277 = vld [vmem:[#allocation8 + $0x10] sm:$0xff]
    %v278 = vld [vmem:[#allocation8 + $0x18] sm:$0xff]
    %v279 = vld [vmem:[#allocation8 + $0x20] sm:$0xff]
    %v280 = vld [vmem:[#allocation8 + $0x28] sm:$0xff]
    %v281 = vld [vmem:[#allocation8 + $0x30] sm:$0xff]
    %v282 = vld [vmem:[#allocation8 + $0x38] sm:$0xff]
    %v283 = vld [vmem:[#allocation8 + $0x40] sm:$0xff]
    %v284 = vld [vmem:[#allocation8 + $0x48] sm:$0xff]
    %v285 = vld [vmem:[#allocation8 + $0x50] sm:$0xff]
    %v286 = vld [vmem:[#allocation8 + $0x58] sm:$0xff]
    %v287 = vld [vmem:[#allocation8 + $0x60] sm:$0xff]
    %v288 = vld [vmem:[#allocation8 + $0x68] sm:$0xff]
    %v289 = vld [vmem:[#allocation8 + $0x70] sm:$0xff]
    %v290 = vld [vmem:[#allocation8 + $0x78] sm:$0xff]
    %v291 = vld [vmem:[%s6] sm:$0x3]
    %v293 = vlaneseq
    %v294 = vshrl.u32 %v293, 7
    %v295 = vsub.s32 0, %v294
    %v296 = vrot.slane %v291, %v295
    %v297 = vlaneseq
    %v298 = vshrl.u32 %v297, 7
    %v299 = vsub.s32 1, %v298
    %v300 = vrot.slane %v291, %v299
    %v319 = vunpack.c.l.b16 %v275
    %v320 = vunpack.c.h.b16 %v275
    %v321 = vunpack.c.l.b16 %v276
    %v322 = vunpack.c.h.b16 %v276
    %v323 = vunpack.c.l.b16 %v277
    %v324 = vunpack.c.h.b16 %v277
    %v325 = vunpack.c.l.b16 %v278
    %v326 = vunpack.c.h.b16 %v278
    %v327 = vunpack.c.l.b16 %v279
    %v328 = vunpack.c.h.b16 %v279
    %v329 = vunpack.c.l.b16 %v280
    %v330 = vunpack.c.h.b16 %v280
    %v331 = vunpack.c.l.b16 %v281
    %v332 = vunpack.c.h.b16 %v281
    %v333 = vunpack.c.l.b16 %v282
    %v334 = vunpack.c.h.b16 %v282
    %v335 = vunpack.c.l.b16 %v283
    %v336 = vunpack.c.h.b16 %v283
    %v337 = vunpack.c.l.b16 %v284
    %v338 = vunpack.c.h.b16 %v284
    %v339 = vunpack.c.l.b16 %v285
    %v340 = vunpack.c.h.b16 %v285
    %v341 = vunpack.c.l.b16 %v286
    %v342 = vunpack.c.h.b16 %v286
    %v343 = vunpack.c.l.b16 %v287
    %v344 = vunpack.c.h.b16 %v287
    %v345 = vunpack.c.l.b16 %v288
    %v346 = vunpack.c.h.b16 %v288
    %v347 = vunpack.c.l.b16 %v289
    %v348 = vunpack.c.h.b16 %v289
    %v349 = vunpack.c.l.b16 %v290
    %v350 = vunpack.c.h.b16 %v290
    %v351 = vpack.c.b16 %v321, %v319
    %v352 = vpack.c.b16 %v322, %v320
    %v353 = vpack.c.b16 %v325, %v323
    %v354 = vpack.c.b16 %v326, %v324
    %v355 = vpack.c.b16 %v329, %v327
    %v356 = vpack.c.b16 %v330, %v328
    %v357 = vpack.c.b16 %v333, %v331
    %v358 = vpack.c.b16 %v334, %v332
    %v359 = vpack.c.b16 %v337, %v335
    %v360 = vpack.c.b16 %v338, %v336
    %v361 = vpack.c.b16 %v341, %v339
    %v362 = vpack.c.b16 %v342, %v340
    %v363 = vpack.c.b16 %v345, %v343
    %v364 = vpack.c.b16 %v346, %v344
    %v365 = vpack.c.b16 %v349, %v347
    %v366 = vpack.c.b16 %v350, %v348
    %383 = vmatprep.subr.bf16.mxu0 %v352
    %384 = vmatpush1.bf16.msra.mxu0 %v351
    %385 = vmatprep.subr.bf16.mxu0 %v354
    %386 = vmatpush1.bf16.msra.mxu0 %v353
    %387 = vmatprep.subr.bf16.mxu0 %v356
    %388 = vmatpush1.bf16.msra.mxu0 %v355
    %389 = vmatprep.subr.bf16.mxu0 %v358
    %390 = vmatpush1.bf16.msra.mxu0 %v357
    %391 = vmatprep.subr.bf16.mxu0 %v360
    %392 = vmatpush1.bf16.msra.mxu0 %v359
    %393 = vmatprep.subr.bf16.mxu0 %v362
    %394 = vmatpush1.bf16.msra.mxu0 %v361
    %395 = vmatprep.subr.bf16.mxu0 %v364
    %396 = vmatpush1.bf16.msra.mxu0 %v363
    %397 = vmatprep.subr.bf16.mxu0 %v366
    %398 = vmatpush1.bf16.msra.mxu0 %v365
    %399 = vmatprep.subr.bf16.mxu0 0
    %400 = vmatpush1.bf16.msra.mxu0 0
    %401 = vmatprep.subr.bf16.mxu0 0
    %402 = vmatpush1.bf16.msra.mxu0 0
    %403 = vmatprep.subr.bf16.mxu0 0
    %404 = vmatpush1.bf16.msra.mxu0 0
    %405 = vmatprep.subr.bf16.mxu0 0
    %406 = vmatpush1.bf16.msra.mxu0 0
    %407 = vmatprep.subr.bf16.mxu0 0
    %408 = vmatpush1.bf16.msra.mxu0 0
    %409 = vmatprep.subr.bf16.mxu0 0
    %410 = vmatpush1.bf16.msra.mxu0 0
    %411 = vmatprep.subr.bf16.mxu0 0
    %412 = vmatpush1.bf16.msra.mxu0 0
    %413 = vmatprep.subr.bf16.mxu0 0
    %414 = vmatpush1.bf16.msra.mxu0 0
    %415 = vmatprep.mubr.bf16.mxu0 0
    %416 = vmatmul.mubr.bf16.gmra.mrb[0].mxu0 %v274
    %v417 = vpop.f32.mrb[0].mxu0
    %v418 = vadd.f32 %v296, %v417
    %v419 = vpop.f32.mrb[0].mxu0
    %v420 = vadd.f32 %v300, %v419
    %v421 = vpop.f32.mrb[0].mxu0
    %v422 = vadd.f32 %v296, %v421
    %v423 = vpop.f32.mrb[0].mxu0
    %v424 = vadd.f32 %v300, %v423
    %425 = vdwg.mxu0
    %426 = vst [vmem:[#allocation10] sm:$0xff] %v418
    %427 = vst [vmem:[#allocation10 + $0x8] sm:$0xff] %v422
    %vm428 = vcmp.gt.f32.partialorder %v420, 0.1
    %vm429 = vcmp.gt.f32.partialorder %v424, 0.1
    %v430 = vsel %vm428, 1.0, 0.0
    %v431 = vsel %vm429, 1.0, 0.0
    %v432 = vpack.c.bf16 %v431, %v430
    %v434 = vunpack.c.l.b16 %v432
    %v435 = vunpack.c.h.b16 %v432
    %v436 = vpack.c.b16 %v434, %v434
    %v437 = vpack.c.b16 %v435, %v435
    %440 = vst [vmem:[#allocation11] sm:$0xf] %v436
    %441 = vst [vmem:[#allocation11 + $0x4] sm:$0xf] %v437
    // Predicated region
    $region46: #{tpu_custom_call.1} parent=1 // pred_check
      _
    $region47: #{tpu_custom_call.1} parent=1 // pred_check_branch
      %443 = sbr.rel (0) target = $region49
    $region48: #{tpu_custom_call.1} parent=1 // pred_region
      %s445 = ssub.s32 256, 256
      %446 = vsyncadd [#allocation4], %s445
      %s447 = sshll.u32 [#allocation10], 4
      %s448 = int_to_ptr.vmem [resolvable:$true] %s447
      %453 = dma.vmem_to_hbm [thread:$0]  %s448, 256, %s7, [#allocation4], 128, 128, 8
    $region49: #{tpu_custom_call.1} parent=1 // pred_fallthru
      _
    // Predicated region
    $region50: #{tpu_custom_call.1} parent=1 // pred_check
      _
    $region51: #{tpu_custom_call.1} parent=1 // pred_check_branch
      %455 = sbr.rel (0) target = $region53
    $region52: #{tpu_custom_call.1} parent=1 // pred_region
      %s457 = ssub.s32 128, 128
      %458 = vsyncadd [#allocation12], %s457
      %s459 = sshll.u32 [#allocation11], 4
      %s460 = int_to_ptr.vmem [resolvable:$true] %s459
      %465 = dma.vmem_to_hbm [thread:$0]  %s460, 128, %s8, [#allocation12], 64, 64, 4
    $region53: #{tpu_custom_call.1} parent=1 // pred_fallthru
      _
    // Predicated region
    $region54: #{tpu_custom_call.1} parent=1 // pred_check
      _
    $region55: #{tpu_custom_call.1} parent=1 // pred_check_branch
      %467 = sbr.rel (0) target = $region57
    $region56: #{tpu_custom_call.1} parent=1 // pred_region
      %468 = dma.done [#allocation4], 256
    $region57: #{tpu_custom_call.1} parent=1 // pred_fallthru
      _
    // Predicated region
    $region58: #{tpu_custom_call.1} parent=1 // pred_check
      _
    $region59: #{tpu_custom_call.1} parent=1 // pred_check_branch
      %470 = sbr.rel (0) target = $region61
    $region60: #{tpu_custom_call.1} parent=1 // pred_region
      %471 = dma.done [#allocation12], 128
    $region61: #{tpu_custom_call.1} parent=1 // pred_fallthru
      _
    %472 = vsyncpa [#allocation3], 1
    %473 = vsyncpa [#allocation6], 1
    %474 = vsyncpa [#allocation9], 1
    %475 = vsyncpa [#allocation4], 1
    %476 = vsyncpa [#allocation12], 1

</llo_original>
